<compile_context>
chip_gen: v5e
topology: v5e:2x2
jax: 0.10.0
libtpu: 0.0.40
codegen_flags: <defaults>
</compile_context>

<pallas_src>
import numpy as np
import jax
import jax.numpy as jnp
from jax import lax
from jax.experimental import pallas as pl
from jax.experimental.pallas import tpu as pltpu

# ------------- hyper-parameters (match IMPO.__init__) ---------------------
IN_CHANNELS = 16                                    # F
OUT_CHANNELS = 8                                    # F'
HEADS = 2                                           # H
NUM_CLUSTERS_PER_CLASS = 1
NUM_CLASSES = 2
TAU = 1.0
K1 = NUM_CLUSTERS_PER_CLASS * NUM_CLASSES           # num_clusters1 = 2
K2 = NUM_CLUSTERS_PER_CLASS * (NUM_CLASSES + 1)     # num_clusters2 = 3
# forward() hard-codes F.one_hot(..., 3), so K2 must be 3
assert K2 == 3


def impo_kernel(k_ref, ksq_ref, x_ref, mask_ref, adj_ref, w_ref,
                xout_ref, st_ref, sraw_ref, dist_ref):
    # k_ref   : (H*K, F)      all heads stacked
    # ksq_ref : (H*K, 1)      precomputed ||k||^2 (grid-invariant)
    # x_ref   : (BT*N, F)     BT graphs' node features
    # mask_ref: (1, BT*N)
    # adj_ref : (1, BT*N, BT*N)  block-diagonal adjacency of the BT graphs
    # w_ref   : (F, Fout)
    # xout_ref: (BT, K, Fout)
    # st_ref / sraw_ref : (K, BT*N)   (node axis on lanes -> dense stores)
    # dist_ref: (H, K, BT*N)
    H, K, BTN = dist_ref.shape
    BT = xout_ref.shape[0]
    N = BTN // BT

    x = x_ref[...]                                    # (BTN, F)
    mask = mask_ref[...]                              # (1, BTN)
    adjm = adj_ref[0]                                 # (BTN, BTN)

    # --- student-t distances for all heads in ONE MXU push ------------------
    # d2[hk, n] = ||k_hk||^2 + ||x_n||^2 - 2 <k_hk, x_n>
    kx = lax.dot_general(k_ref[...], x, (((1,), (1,)), ((), ())),
                         preferred_element_type=jnp.float32)     # (H*K, BTN)
    x_sq = jnp.sum(x * x, axis=1)                                # (BTN,)
    d2 = jnp.maximum(ksq_ref[...] + x_sq[None, :] - 2.0 * kx, 0.0)
    if TAU == 1.0:
        # (1 + d2/tau)^(-(tau+1)/2) == 1/(1+d2): single divide, no exp/log.
        t = 1.0 / (1.0 + d2)
    else:
        t = jnp.exp((-(TAU + 1.0) / 2.0) * jnp.log(1.0 + d2 / TAU))

    # per-head normalisation over clusters, then sum over heads
    S0 = jnp.zeros((K, BTN), jnp.float32)
    for h in range(H):                                # H is small & static
        th = t[h * K:(h + 1) * K, :]                  # (K, BTN)
        dist_ref[h] = th                              # lane-dense store
        S0 = S0 + th / jnp.sum(th, axis=0, keepdims=True)

    # --- mask padded nodes ---------------------------------------------------
    S0 = S0 * mask                                    # (K, BTN)

    # --- adjacency propagation  S1^T = S0^T contracted with adj over j ------
    S1 = lax.dot_general(S0, adjm, (((1,), (1,)), ((), ())),
                         preferred_element_type=jnp.float32)     # (K, BTN)

    # --- degree normalisation via reductions (no ones-vector matmuls) -------
    deg = 0.5 * (jnp.sum(adjm, axis=1) + jnp.sum(adjm, axis=0))  # (BTN,)
    deg = jnp.where(deg == 0.0, 1.0, deg)
    S1 = S1 / deg[None, :]
    sraw_ref[...] = S1                                # S_raw

    # --- softmax over clusters (sublane axis), gated by one-hot of argmax ---
    mx = jnp.max(S1, axis=0, keepdims=True)
    e = jnp.exp(S1 - mx)
    g = e / jnp.sum(e, axis=0, keepdims=True)         # softmax over K
    row = lax.broadcasted_iota(jnp.int32, (K, BTN), 0)
    gmax = jnp.max(g, axis=0, keepdims=True)
    first = jnp.min(jnp.where(g == gmax, row, K), axis=0, keepdims=True)
    S = jnp.where(row == first, g, 0.0)               # g * one_hot(argmax)
    st_ref[...] = S

    # --- X' = lin(S^T @ X) per graph ----------------------------------------
    # TODO(synk): for v6e/v7x at large N the two matmul operands (adjm, x, S)
    # could be cast to bf16 with f32 accumulation; kept f32 here for exactness.
    w = w_ref[...]
    for b in range(BT):                               # BT is small & static
        s_b = S[:, b * N:(b + 1) * N]                 # (K, N)
        x_b = x[b * N:(b + 1) * N, :]                 # (N, F)
        xk_b = jnp.dot(s_b, x_b, preferred_element_type=jnp.float32)   # (K, F)
        xout_ref[b] = jnp.dot(xk_b, w, preferred_element_type=jnp.float32)


def impo_forward(k, x_dense, mask, adj, w_t, *, graphs_per_block=None):
    B, N, F = x_dense.shape
    H, K, _ = k.shape
    Fout = w_t.shape[1]
    BT = B if graphs_per_block is None else graphs_per_block
    assert B % BT == 0, "batch must be divisible by graphs_per_block"
    nb = B // BT
    BTN = BT * N
    # (8,128) BlockSpec rule: a multi-block lane axis must be 128-aligned.
    assert nb == 1 or (BTN % 128 == 0), "choose BT so BT*N % 128 == 0 (or BT=B)"

    # grid-invariant precompute (hoisted out of the kernel)
    k_all = k.reshape(H * K, F).astype(jnp.float32)
    k_sq = jnp.sum(k_all * k_all, axis=1, keepdims=True)          # (H*K, 1)
    x_flat = x_dense.reshape(B * N, F).astype(jnp.float32)
    mask_flat = mask.reshape(1, B * N).astype(jnp.float32)

    # block-diagonal adjacency per grid block: (nb, BT*N, BT*N)
    adj4 = adj.astype(jnp.float32).reshape(nb, BT, N, N)
    eye_bt = jnp.eye(BT, dtype=jnp.float32)
    adj_bd = jnp.einsum("gbij,bc->gbicj", adj4, eye_bt).reshape(nb, BTN, BTN)

    out_shapes = (
        jax.ShapeDtypeStruct((B, K, Fout), jnp.float32),   # S^T X W (full K)
        jax.ShapeDtypeStruct((K, B * N), jnp.float32),     # S   (transposed)
        jax.ShapeDtypeStruct((K, B * N), jnp.float32),     # S_raw (transposed)
        jax.ShapeDtypeStruct((H, K, B * N), jnp.float32),  # dist (transposed)
    )
    xfull, S_t, Sraw_t, dist_t = pl.pallas_call(
        impo_kernel,
        out_shape=out_shapes,
        grid=(nb,),
        in_specs=[
            pl.BlockSpec((H * K, F), lambda g: (0, 0)),
            pl.BlockSpec((H * K, 1), lambda g: (0, 0)),
            pl.BlockSpec((BTN, F), lambda g: (g, 0)),
            pl.BlockSpec((1, BTN), lambda g: (0, g)),
            pl.BlockSpec((1, BTN, BTN), lambda g: (g, 0, 0)),
            pl.BlockSpec((F, Fout), lambda g: (0, 0)),
        ],
        out_specs=(
            pl.BlockSpec((BT, K, Fout), lambda g: (g, 0, 0)),
            pl.BlockSpec((K, BTN), lambda g: (0, g)),
            pl.BlockSpec((K, BTN), lambda g: (0, g)),
            pl.BlockSpec((H, K, BTN), lambda g: (0, 0, g)),
        ),
        compiler_params=pltpu.CompilerParams(
            dimension_semantics=("parallel",)),
    )(k_all, k_sq, x_flat, mask_flat, adj_bd, w_t)

    # back to the PyTorch layouts
    S = jnp.transpose(S_t.reshape(K, B, N), (1, 2, 0))             # (B, N, K)
    S_raw = jnp.transpose(Sraw_t.reshape(K, B, N), (1, 2, 0))      # (B, N, K)
    dist = jnp.transpose(dist_t.reshape(H, K, B, N), (2, 0, 3, 1)) # (B, H, N, K)
    return xfull[:, :K1, :], S, S_raw, dist, mask[..., 0] > 0


def impo_reference(k, x_dense, mask, adj, w_t):
    """Pure-JAX mirror of the PyTorch forward (for verification)."""
    B, N, F = x_dense.shape
    H, K, _ = k.shape
    kf = k.reshape(H * K, F)
    xf = x_dense.reshape(B * N, F)
    d2 = jnp.sum((kf[:, None, :] - xf[None, :, :]) ** 2, axis=-1)       # (HK, BN)
    dist = (1.0 + d2 / TAU) ** (-(TAU + 1.0) / 2.0)
    dist = dist.reshape(H, K, B, N).transpose(2, 0, 3, 1)               # (B,H,N,K)
    S = dist / dist.sum(-1, keepdims=True)
    S = S.sum(1) * mask                                                 # (B,N,K)
    S = jnp.einsum("bij,bjk->bik", adj, S)
    deg = 0.5 * (adj.sum(2) + adj.sum(1))
    deg = jnp.where(deg == 0.0, 1.0, deg)
    S = S / deg[..., None]
    S_raw = S
    g = jax.nn.softmax(S, axis=-1)
    S = g * jax.nn.one_hot(jnp.argmax(g, axis=-1), K)
    xk = jnp.einsum("bnk,bnf->bkf", S, x_dense)
    out = xk @ w_t
    return out[:, :K1, :], S, S_raw, dist


if __name__ == "__main__":
    key = jax.random.PRNGKey(0)
    kx, kk, kw = jax.random.split(key, 3)

    # two graphs (ring topology): 8 nodes and 6 nodes
    nodes_per_graph = [8, 6]
    B = len(nodes_per_graph)
    N = max(nodes_per_graph)
    total = sum(nodes_per_graph)

    x_flat = jax.random.normal(kx, (total, IN_CHANNELS), dtype=jnp.float32)
    batch = np.concatenate([np.full(n, i) for i, n in enumerate(nodes_per_graph)])
    edges = []
    off = 0
    for n in nodes_per_graph:
        for i in range(n):
            j = (i + 1) % n
            edges.append((off + i, off + j))
            edges.append((off + j, off + i))
        off += n
    edge_index = np.array(edges, dtype=np.int64).T                       # (2, E)

    # glue: to_dense_batch / unbatch_edge_index / sparse COO -> dense adjacency
    x_dense = np.zeros((B, N, IN_CHANNELS), np.float32)
    mask = np.zeros((B, N, 1), np.float32)
    off = 0
    for b, n in enumerate(nodes_per_graph):
        x_dense[b, :n] = np.asarray(x_flat[off:off + n])
        mask[b, :n, 0] = 1.0
        off += n
    adj = np.zeros((B, N, N), np.float32)
    goff = np.cumsum([0] + nodes_per_graph)
    for e in range(edge_index.shape[1]):
        src, dst = edge_index[:, e]
        b = int(batch[src])
        adj[b, src - goff[b], dst - goff[b]] += 1.0

    # parameters (deterministic): orthonormal-ish cluster keys per head,
    # Linear(in,out,bias=False) weight (out,in) -> pass its transpose.
    a = jax.random.normal(kk, (HEADS, IN_CHANNELS, K2), dtype=jnp.float32)
    q, _ = jnp.linalg.qr(a)
    k_param = jnp.transpose(q, (0, 2, 1))                                # (H, K2, F)
    w_lin = jax.random.normal(kw, (OUT_CHANNELS, IN_CHANNELS),
                              dtype=jnp.float32) / np.sqrt(IN_CHANNELS)
    w_t = w_lin.T                                                        # (F, Fout)

    x_dense = jnp.asarray(x_dense)
    mask_j = jnp.asarray(mask)
    adj_j = jnp.asarray(adj)

    out, S, S_raw, dist, m = jax.jit(impo_forward)(k_param, x_dense, mask_j,
                                                   adj_j, w_t)
    jax.block_until_ready(out)

    ro, rS, rSraw, rdist = impo_reference(k_param, x_dense, mask_j, adj_j, w_t)
    np.testing.assert_allclose(np.asarray(out), np.asarray(ro), rtol=1e-4, atol=1e-4)
    np.testing.assert_allclose(np.asarray(S), np.asarray(rS), rtol=1e-4, atol=2e-5)
    np.testing.assert_allclose(np.asarray(S_raw), np.asarray(rSraw), rtol=1e-4, atol=2e-5)
    np.testing.assert_allclose(np.asarray(dist), np.asarray(rdist), rtol=1e-4, atol=2e-5)

    # TODO(synk): impo_loss / kl_loss and the gumbel branch are not part of
    # forward() and are not implemented; the declared Conv2d head-mixer is
    # unused by forward() (heads are summed instead).
    print("KERNEL_OK")
</pallas_src>

<mosaic_0001>
module attributes {stable_mosaic.version = 11 : i64} {
  func.func @impo_kernel(%arg0: i32, %arg1: memref<6x16xf32, #tpu.memory_space<vmem>>, %arg2: memref<6x1xf32, #tpu.memory_space<vmem>>, %arg3: memref<16x16xf32, #tpu.memory_space<vmem>>, %arg4: memref<1x16xf32, #tpu.memory_space<vmem>>, %arg5: memref<1x16x16xf32, #tpu.memory_space<vmem>>, %arg6: memref<16x8xf32, #tpu.memory_space<vmem>>, %arg7: memref<2x3x8xf32, #tpu.memory_space<vmem>>, %arg8: memref<3x16xf32, #tpu.memory_space<vmem>>, %arg9: memref<3x16xf32, #tpu.memory_space<vmem>>, %arg10: memref<2x3x16xf32, #tpu.memory_space<vmem>>) attributes {dimension_semantics = [#tpu.dimension_semantics<parallel>], iteration_bounds = array<i64: 1>, scalar_prefetch = 0 : i64, scratch_operands = 0 : i64, tpu.core_type = #tpu.core_type<tc>, window_params = [{pipeline_mode = #tpu.pipeline_mode<synchronous>, transform_indices = @transform_0, window_bounds = array<i64: 6, 16>}, {pipeline_mode = #tpu.pipeline_mode<synchronous>, transform_indices = @transform_1, window_bounds = array<i64: 6, 1>}, {transform_indices = @transform_2, window_bounds = array<i64: 16, 16>}, {transform_indices = @transform_3, window_bounds = array<i64: 1, 16>}, {transform_indices = @transform_4, window_bounds = array<i64: 1, 16, 16>}, {pipeline_mode = #tpu.pipeline_mode<synchronous>, transform_indices = @transform_5, window_bounds = array<i64: 16, 8>}, {transform_indices = @transform_6, window_bounds = array<i64: 2, 3, 8>}, {transform_indices = @transform_7, window_bounds = array<i64: 3, 16>}, {transform_indices = @transform_8, window_bounds = array<i64: 3, 16>}, {transform_indices = @transform_9, window_bounds = array<i64: 2, 3, 16>}]} {
    %c0 = arith.constant 0 : index
    %c0_0 = arith.constant 0 : index
    %0 = vector.load %arg3[%c0, %c0_0] : memref<16x16xf32, #tpu.memory_space<vmem>>, vector<16x16xf32>
    %c0_1 = arith.constant 0 : index
    %c0_2 = arith.constant 0 : index
    %1 = vector.load %arg4[%c0_1, %c0_2] : memref<1x16xf32, #tpu.memory_space<vmem>>, vector<1x16xf32>
    %c0_3 = arith.constant 0 : index
    %c0_4 = arith.constant 0 : index
    %c0_5 = arith.constant 0 : index
    %2 = vector.load %arg5[%c0_3, %c0_4, %c0_5] : memref<1x16x16xf32, #tpu.memory_space<vmem>>, vector<1x16x16xf32>
    %3 = vector.shape_cast %2 : vector<1x16x16xf32> to vector<16x16xf32>
    %c0_6 = arith.constant 0 : index
    %c0_7 = arith.constant 0 : index
    %4 = vector.load %arg1[%c0_6, %c0_7] : memref<6x16xf32, #tpu.memory_space<vmem>>, vector<6x16xf32>
    %cst = arith.constant dense<0.000000e+00> : vector<6x16xf32>
    %5 = tpu.matmul %4, %0, %cst {dimension_numbers = #tpu.dot_dimension_numbers<[1], [1], [0], [0], [0, 0, 1, 0], [], []>} : vector<6x16xf32>, vector<16x16xf32>, vector<6x16xf32> -> vector<6x16xf32>
    %6 = arith.mulf %0, %0 : vector<16x16xf32>
    %cst_8 = arith.constant dense<0.000000e+00> : vector<16xf32>
    %7 = vector.multi_reduction <add>, %6, %cst_8 [1] : vector<16x16xf32> to vector<16xf32>
    %c0_9 = arith.constant 0 : index
    %c0_10 = arith.constant 0 : index
    %8 = vector.load %arg2[%c0_9, %c0_10] : memref<6x1xf32, #tpu.memory_space<vmem>>, vector<6x1xf32>
    %9 = vector.shape_cast %7 : vector<16xf32> to vector<1x16xf32>
    %10 = vector.broadcast %8 : vector<6x1xf32> to vector<6x16xf32>
    %11 = vector.broadcast %9 : vector<1x16xf32> to vector<6x16xf32>
    %12 = arith.addf %10, %11 : vector<6x16xf32>
    %cst_11 = arith.constant 2.000000e+00 : f32
    %13 = vector.broadcast %cst_11 : f32 to vector<6x16xf32>
    %14 = arith.mulf %13, %5 : vector<6x16xf32>
    %15 = arith.subf %12, %14 : vector<6x16xf32>
    %cst_12 = arith.constant 0.000000e+00 : f32
    %16 = vector.broadcast %cst_12 : f32 to vector<6x16xf32>
    %17 = arith.maximumf %15, %16 : vector<6x16xf32>
    %cst_13 = arith.constant 1.000000e+00 : f32
    %18 = vector.broadcast %cst_13 : f32 to vector<6x16xf32>
    %19 = arith.addf %18, %17 : vector<6x16xf32>
    %cst_14 = arith.constant 1.000000e+00 : f32
    %20 = vector.broadcast %cst_14 : f32 to vector<6x16xf32>
    %21 = arith.divf %20, %19 : vector<6x16xf32>
    %cst_15 = arith.constant 0.000000e+00 : f32
    %22 = vector.broadcast %cst_15 : f32 to vector<3x16xf32>
    %23 = vector.extract_strided_slice %21 {offsets = [0, 0], sizes = [3, 16], strides = [1, 1]} : vector<6x16xf32> to vector<3x16xf32>
    %c0_16 = arith.constant 0 : index
    %c0_17 = arith.constant 0 : index
    %c0_18 = arith.constant 0 : index
    %24 = vector.load %arg10[%c0_16, %c0_17, %c0_18] : memref<2x3x16xf32, #tpu.memory_space<vmem>>, vector<1x3x16xf32>
    %25 = vector.shape_cast %24 : vector<1x3x16xf32> to vector<3x16xf32>
    %26 = vector.shape_cast %23 : vector<3x16xf32> to vector<1x3x16xf32>
    tpu.vector_store %arg10[%c0_16, %c0_17, %c0_18], %26 {strides = array<i32>} : memref<2x3x16xf32, #tpu.memory_space<vmem>>, vector<1x3x16xf32>,
    %cst_19 = arith.constant dense<0.000000e+00> : vector<16xf32>
    %27 = vector.multi_reduction <add>, %23, %cst_19 [0] : vector<3x16xf32> to vector<16xf32>
    %28 = vector.shape_cast %27 : vector<16xf32> to vector<1x16xf32>
    %29 = vector.broadcast %28 : vector<1x16xf32> to vector<3x16xf32>
    %30 = arith.divf %23, %29 : vector<3x16xf32>
    %31 = arith.addf %22, %30 : vector<3x16xf32>
    %32 = vector.extract_strided_slice %21 {offsets = [3, 0], sizes = [3, 16], strides = [1, 1]} : vector<6x16xf32> to vector<3x16xf32>
    %c1 = arith.constant 1 : index
    %c0_20 = arith.constant 0 : index
    %c0_21 = arith.constant 0 : index
    %33 = vector.load %arg10[%c1, %c0_20, %c0_21] : memref<2x3x16xf32, #tpu.memory_space<vmem>>, vector<1x3x16xf32>
    %34 = vector.shape_cast %33 : vector<1x3x16xf32> to vector<3x16xf32>
    %35 = vector.shape_cast %32 : vector<3x16xf32> to vector<1x3x16xf32>
    tpu.vector_store %arg10[%c1, %c0_20, %c0_21], %35 {strides = array<i32>} : memref<2x3x16xf32, #tpu.memory_space<vmem>>, vector<1x3x16xf32>,
    %cst_22 = arith.constant dense<0.000000e+00> : vector<16xf32>
    %36 = vector.multi_reduction <add>, %32, %cst_22 [0] : vector<3x16xf32> to vector<16xf32>
    %37 = vector.shape_cast %36 : vector<16xf32> to vector<1x16xf32>
    %38 = vector.broadcast %37 : vector<1x16xf32> to vector<3x16xf32>
    %39 = arith.divf %32, %38 : vector<3x16xf32>
    %40 = arith.addf %31, %39 : vector<3x16xf32>
    %41 = vector.broadcast %1 : vector<1x16xf32> to vector<3x16xf32>
    %42 = arith.mulf %40, %41 : vector<3x16xf32>
    %cst_23 = arith.constant dense<0.000000e+00> : vector<3x16xf32>
    %43 = tpu.matmul %42, %3, %cst_23 {dimension_numbers = #tpu.dot_dimension_numbers<[1], [1], [0], [0], [0, 0, 1, 0], [], []>} : vector<3x16xf32>, vector<16x16xf32>, vector<3x16xf32> -> vector<3x16xf32>
    %cst_24 = arith.constant dense<0.000000e+00> : vector<16xf32>
    %44 = vector.multi_reduction <add>, %3, %cst_24 [1] : vector<16x16xf32> to vector<16xf32>
    %cst_25 = arith.constant dense<0.000000e+00> : vector<16xf32>
    %45 = vector.multi_reduction <add>, %3, %cst_25 [0] : vector<16x16xf32> to vector<16xf32>
    %46 = arith.addf %44, %45 : vector<16xf32>
    %cst_26 = arith.constant 5.000000e-01 : f32
    %47 = vector.broadcast %cst_26 : f32 to vector<16xf32>
    %48 = arith.mulf %47, %46 : vector<16xf32>
    %cst_27 = arith.constant 0.000000e+00 : f32
    %49 = vector.broadcast %cst_27 : f32 to vector<16xf32>
    %50 = arith.cmpf oeq, %48, %49 : vector<16xf32>
    %cst_28 = arith.constant 1.000000e+00 : f32
    %51 = vector.broadcast %cst_28 : f32 to vector<16xf32>
    %52 = arith.select %50, %51, %48 : vector<16xi1>, vector<16xf32>
    %53 = vector.shape_cast %52 : vector<16xf32> to vector<1x16xf32>
    %54 = vector.broadcast %53 : vector<1x16xf32> to vector<3x16xf32>
    %55 = arith.divf %43, %54 : vector<3x16xf32>
    %c0_29 = arith.constant 0 : index
    %c0_30 = arith.constant 0 : index
    %56 = vector.load %arg9[%c0_29, %c0_30] : memref<3x16xf32, #tpu.memory_space<vmem>>, vector<3x16xf32>
    tpu.vector_store %arg9[%c0_29, %c0_30], %55 {strides = array<i32>} : memref<3x16xf32, #tpu.memory_space<vmem>>, vector<3x16xf32>,
    %cst_31 = arith.constant dense<0xFF800000> : vector<16xf32>
    %57 = vector.multi_reduction <maximumf>, %55, %cst_31 [0] : vector<3x16xf32> to vector<16xf32>
    %58 = vector.shape_cast %57 : vector<16xf32> to vector<1x16xf32>
    %59 = vector.broadcast %58 : vector<1x16xf32> to vector<3x16xf32>
    %60 = arith.subf %55, %59 : vector<3x16xf32>
    %61 = math.exp %60 : vector<3x16xf32>
    %cst_32 = arith.constant dense<0.000000e+00> : vector<16xf32>
    %62 = vector.multi_reduction <add>, %61, %cst_32 [0] : vector<3x16xf32> to vector<16xf32>
    %63 = vector.shape_cast %62 : vector<16xf32> to vector<1x16xf32>
    %64 = vector.broadcast %63 : vector<1x16xf32> to vector<3x16xf32>
    %65 = arith.divf %61, %64 : vector<3x16xf32>
    %66 = tpu.iota {dimensions = array<i32: 0>} : vector<3x16xi32>
    %cst_33 = arith.constant dense<0xFF800000> : vector<16xf32>
    %67 = vector.multi_reduction <maximumf>, %65, %cst_33 [0] : vector<3x16xf32> to vector<16xf32>
    %68 = vector.shape_cast %67 : vector<16xf32> to vector<1x16xf32>
    %69 = vector.broadcast %68 : vector<1x16xf32> to vector<3x16xf32>
    %70 = arith.cmpf oeq, %65, %69 : vector<3x16xf32>
    %c3_i32 = arith.constant 3 : i32
    %71 = vector.broadcast %c3_i32 : i32 to vector<3x16xi32>
    %72 = arith.select %70, %66, %71 : vector<3x16xi1>, vector<3x16xi32>
    %cst_34 = arith.constant dense<2147483647> : vector<16xi32>
    %73 = vector.multi_reduction <minsi>, %72, %cst_34 [0] : vector<3x16xi32> to vector<16xi32>
    %74 = vector.shape_cast %73 : vector<16xi32> to vector<1x16xi32>
    %75 = vector.broadcast %74 : vector<1x16xi32> to vector<3x16xi32>
    %76 = arith.cmpi eq, %66, %75 : vector<3x16xi32>
    %cst_35 = arith.constant 0.000000e+00 : f32
    %77 = vector.broadcast %cst_35 : f32 to vector<3x16xf32>
    %78 = arith.select %76, %65, %77 : vector<3x16xi1>, vector<3x16xf32>
    %c0_36 = arith.constant 0 : index
    %c0_37 = arith.constant 0 : index
    %79 = vector.load %arg8[%c0_36, %c0_37] : memref<3x16xf32, #tpu.memory_space<vmem>>, vector<3x16xf32>
    tpu.vector_store %arg8[%c0_36, %c0_37], %78 {strides = array<i32>} : memref<3x16xf32, #tpu.memory_space<vmem>>, vector<3x16xf32>,
    %c0_38 = arith.constant 0 : index
    %c0_39 = arith.constant 0 : index
    %80 = vector.load %arg6[%c0_38, %c0_39] : memref<16x8xf32, #tpu.memory_space<vmem>>, vector<16x8xf32>
    %81 = vector.extract_strided_slice %78 {offsets = [0, 0], sizes = [3, 8], strides = [1, 1]} : vector<3x16xf32> to vector<3x8xf32>
    %82 = vector.extract_strided_slice %0 {offsets = [0, 0], sizes = [8, 16], strides = [1, 1]} : vector<16x16xf32> to vector<8x16xf32>
    %cst_40 = arith.constant dense<0.000000e+00> : vector<3x16xf32>
    %83 = tpu.matmul %81, %82, %cst_40 {dimension_numbers = #tpu.dot_dimension_numbers<[1], [0], [0], [1], [0, 0, 1, 1], [], []>} : vector<3x8xf32>, vector<8x16xf32>, vector<3x16xf32> -> vector<3x16xf32>
    %cst_41 = arith.constant dense<0.000000e+00> : vector<3x8xf32>
    %84 = tpu.matmul %83, %80, %cst_41 {dimension_numbers = #tpu.dot_dimension_numbers<[1], [0], [0], [1], [0, 0, 1, 1], [], []>} : vector<3x16xf32>, vector<16x8xf32>, vector<3x8xf32> -> vector<3x8xf32>
    %c0_42 = arith.constant 0 : index
    %c0_43 = arith.constant 0 : index
    %c0_44 = arith.constant 0 : index
    %85 = vector.load %arg7[%c0_42, %c0_43, %c0_44] : memref<2x3x8xf32, #tpu.memory_space<vmem>>, vector<1x3x8xf32>
    %86 = vector.shape_cast %85 : vector<1x3x8xf32> to vector<3x8xf32>
    %87 = vector.shape_cast %84 : vector<3x8xf32> to vector<1x3x8xf32>
    tpu.vector_store %arg7[%c0_42, %c0_43, %c0_44], %87 {strides = array<i32>} : memref<2x3x8xf32, #tpu.memory_space<vmem>>, vector<1x3x8xf32>,
    %88 = vector.extract_strided_slice %78 {offsets = [0, 8], sizes = [3, 8], strides = [1, 1]} : vector<3x16xf32> to vector<3x8xf32>
    %89 = vector.extract_strided_slice %0 {offsets = [8, 0], sizes = [8, 16], strides = [1, 1]} : vector<16x16xf32> to vector<8x16xf32>
    %cst_45 = arith.constant dense<0.000000e+00> : vector<3x16xf32>
    %90 = tpu.matmul %88, %89, %cst_45 {dimension_numbers = #tpu.dot_dimension_numbers<[1], [0], [0], [1], [0, 0, 1, 1], [], []>} : vector<3x8xf32>, vector<8x16xf32>, vector<3x16xf32> -> vector<3x16xf32>
    %cst_46 = arith.constant dense<0.000000e+00> : vector<3x8xf32>
    %91 = tpu.matmul %90, %80, %cst_46 {dimension_numbers = #tpu.dot_dimension_numbers<[1], [0], [0], [1], [0, 0, 1, 1], [], []>} : vector<3x16xf32>, vector<16x8xf32>, vector<3x8xf32> -> vector<3x8xf32>
    %c1_47 = arith.constant 1 : index
    %c0_48 = arith.constant 0 : index
    %c0_49 = arith.constant 0 : index
    %92 = vector.load %arg7[%c1_47, %c0_48, %c0_49] : memref<2x3x8xf32, #tpu.memory_space<vmem>>, vector<1x3x8xf32>
    %93 = vector.shape_cast %92 : vector<1x3x8xf32> to vector<3x8xf32>
    %94 = vector.shape_cast %91 : vector<3x8xf32> to vector<1x3x8xf32>
    tpu.vector_store %arg7[%c1_47, %c0_48, %c0_49], %94 {strides = array<i32>} : memref<2x3x8xf32, #tpu.memory_space<vmem>>, vector<1x3x8xf32>,
    return
  }
  func.func @transform_0(%arg0: i32) -> (i32, i32) {
    %c0_i32 = arith.constant 0 : i32
    %c0_i32_0 = arith.constant 0 : i32
    %c0_i32_1 = arith.constant 0 : i32
    return %c0_i32, %c0_i32_0 : i32, i32
  }
  func.func @transform_1(%arg0: i32) -> (i32, i32) {
    %c0_i32 = arith.constant 0 : i32
    %c0_i32_0 = arith.constant 0 : i32
    %c0_i32_1 = arith.constant 0 : i32
    return %c0_i32, %c0_i32_0 : i32, i32
  }
  func.func @transform_2(%arg0: i32) -> (i32, i32) {
    %c0_i32 = arith.constant 0 : i32
    %c0_i32_0 = arith.constant 0 : i32
    return %arg0, %c0_i32 : i32, i32
  }
  func.func @transform_3(%arg0: i32) -> (i32, i32) {
    %c0_i32 = arith.constant 0 : i32
    %c0_i32_0 = arith.constant 0 : i32
    return %c0_i32, %arg0 : i32, i32
  }
  func.func @transform_4(%arg0: i32) -> (i32, i32, i32) {
    %c0_i32 = arith.constant 0 : i32
    %c0_i32_0 = arith.constant 0 : i32
    %c0_i32_1 = arith.constant 0 : i32
    return %arg0, %c0_i32, %c0_i32_0 : i32, i32, i32
  }
  func.func @transform_5(%arg0: i32) -> (i32, i32) {
    %c0_i32 = arith.constant 0 : i32
    %c0_i32_0 = arith.constant 0 : i32
    %c0_i32_1 = arith.constant 0 : i32
    return %c0_i32, %c0_i32_0 : i32, i32
  }
  func.func @transform_6(%arg0: i32) -> (i32, i32, i32) {
    %c0_i32 = arith.constant 0 : i32
    %c0_i32_0 = arith.constant 0 : i32
    %c0_i32_1 = arith.constant 0 : i32
    return %arg0, %c0_i32, %c0_i32_0 : i32, i32, i32
  }
  func.func @transform_7(%arg0: i32) -> (i32, i32) {
    %c0_i32 = arith.constant 0 : i32
    %c0_i32_0 = arith.constant 0 : i32
    return %c0_i32, %arg0 : i32, i32
  }
  func.func @transform_8(%arg0: i32) -> (i32, i32) {
    %c0_i32 = arith.constant 0 : i32
    %c0_i32_0 = arith.constant 0 : i32
    return %c0_i32, %arg0 : i32, i32
  }
  func.func @transform_9(%arg0: i32) -> (i32, i32, i32) {
    %c0_i32 = arith.constant 0 : i32
    %c0_i32_0 = arith.constant 0 : i32
    %c0_i32_1 = arith.constant 0 : i32
    return %c0_i32, %c0_i32_0, %arg0 : i32, i32, i32
  }
}

</mosaic_0001>

<llo_original>
// kernel: impo_forward.1
$region0: #{impo_forward.1}
  #allocation0 [shape = 'u32[]', space=smem, size = 0x4, offset = 0x4, fixed_abs, tag = 'smem constant byte address 0x4 - core index']
  #allocation1 [shape = 'u32[72,128]{1,0:T(1,128)}', space=vmem, size = 0x9000, scoped, tag = 'internal scratch']
  %s0 = inlined_call_operand.vmem [shape: f32[6,16], index: 0, kind: input, shape index: {}]
  %s1 = inlined_call_operand.vmem [shape: f32[6,1], index: 1, kind: input, shape index: {}]
  %s2 = inlined_call_operand.vmem [shape: f32[16,16], index: 2, kind: input, shape index: {}]
  %s3 = inlined_call_operand.vmem [shape: f32[1,16], index: 3, kind: input, shape index: {}]
  %s4 = inlined_call_operand.vmem [shape: f32[1,16,16], index: 4, kind: input, shape index: {}]
  %s5 = inlined_call_operand.vmem [shape: f32[16,8], index: 5, kind: input, shape index: {}]
  %s6 = inlined_call_operand.vmem [shape: f32[2,3,8], index: 6, kind: output, shape index: {0}]
  %s7 = inlined_call_operand.vmem [shape: f32[3,16], index: 7, kind: output, shape index: {1}]
  %s8 = inlined_call_operand.vmem [shape: f32[3,16], index: 8, kind: output, shape index: {2}]
  %s9 = inlined_call_operand.vmem [shape: f32[2,3,16], index: 9, kind: output, shape index: {3}]
  %10 = xla_tuple %s6, %s7, %s8, %s9
  %s11 = sld [smem:[#allocation0]]
  $region58: #{impo_forward.1} parent=0
    _
  %s13 = ssub.s32 1, %s11
  %s14 = scalar_select 0, %s13, %s11
  // Predicated region
  $region2: #{impo_forward.1} parent=0 // pred_check
    _
  $region3: #{impo_forward.1} parent=0 // pred_check_branch
    %16 = sbr.rel (0) target = $region5
  $region4: #{impo_forward.1} parent=0 // pred_region
    _
  $region5: #{impo_forward.1} parent=0 // pred_fallthru
    _
  // Predicated region
  $region6: #{impo_forward.1} parent=0 // pred_check
    _
  $region7: #{impo_forward.1} parent=0 // pred_check_branch
    %18 = sbr.rel (0) target = $region9
  $region8: #{impo_forward.1} parent=0 // pred_region
    _
  $region9: #{impo_forward.1} parent=0 // pred_fallthru
    _
  // Predicated region
  $region10: #{impo_forward.1} parent=0 // pred_check
    _
  $region11: #{impo_forward.1} parent=0 // pred_check_branch
    %20 = sbr.rel (0) target = $region13
  $region12: #{impo_forward.1} parent=0 // pred_region
    _
  $region13: #{impo_forward.1} parent=0 // pred_fallthru
    _
  // Predicated region
  $region14: #{impo_forward.1} parent=0 // pred_check
    _
  $region15: #{impo_forward.1} parent=0 // pred_check_branch
    %22 = sbr.rel (0) target = $region17
  $region16: #{impo_forward.1} parent=0 // pred_region
    _
  $region17: #{impo_forward.1} parent=0 // pred_fallthru
    _
  // Predicated region
  $region18: #{impo_forward.1} parent=0 // pred_check
    _
  $region19: #{impo_forward.1} parent=0 // pred_check_branch
    %24 = sbr.rel (0) target = $region21
  $region20: #{impo_forward.1} parent=0 // pred_region
    _
  $region21: #{impo_forward.1} parent=0 // pred_fallthru
    _
  // Predicated region
  $region22: #{impo_forward.1} parent=0 // pred_check
    _
  $region23: #{impo_forward.1} parent=0 // pred_check_branch
    %26 = sbr.rel (0) target = $region25
  $region24: #{impo_forward.1} parent=0 // pred_region
    _
  $region25: #{impo_forward.1} parent=0 // pred_fallthru
    _
  %v27 = vld [vmem:[%s2] sm:$0xff]
  %v28 = vld [vmem:[%s2 + $0x8] sm:$0xff]
  %v29 = vld [vmem:[%s3] sm:$0x1]
  %v30 = vld [vmem:[%s4] sm:$0xff]
  %v31 = vld [vmem:[%s4 + $0x8] sm:$0xff]
  %v32 = vld [vmem:[%s0] sm:$0x3f]
  %vm33 = vcmask 130048
  %v35 = vsel %vm33, %v32, 0
  %v38 = vsel %vm33, %v27, 0
  %v41 = vsel %vm33, %v28, 0
  %43 = vmatpush.xpose.msra.mxu0 0.0
  %44 = vmatpush.xpose.msra.mxu0 0.0
  %45 = vmatpush.xpose.msra.mxu0 0.0
  %46 = vmatpush.xpose.msra.mxu0 0.0
  %47 = vmatpush.xpose.msra.mxu0 0.0
  %48 = vmatpush.xpose.msra.mxu0 0.0
  %49 = vmatpush.xpose.msra.mxu0 0.0
  %50 = vmatpush.xpose.msra.mxu0 0.0
  %51 = vmatpush.xpose.msra.mxu0 0.0
  %52 = vmatpush.xpose.msra.mxu0 0.0
  %53 = vmatpush.xpose.msra.mxu0 0.0
  %54 = vmatpush.xpose.msra.mxu0 0.0
  %55 = vmatpush.xpose.msra.mxu0 0.0
  %56 = vmatpush.xpose.msra.mxu0 0.0
  %57 = vmatpush.xpose.msra.mxu0 %v41
  %58 = vmatpush.xpose.msra.mxu0 %v38
  %59 = vmatmul.f32.gmra.mxu0 %v35
  %v60 = vpop.f32.mrf.mxu0
  %v61 = vadd.f32 0.0, %v60
  %62 = vdwg.mxu0
  %v63 = vmul.f32 %v27, %v27
  %v64 = vmul.f32 %v28, %v28
  %v65 = vsel %vm33, %v63, 0.0
  %66 = vadd.xlane.f32.xlu0 %v65
  %v67 = vpop.xlane.xlu0 %66
  %v68 = vsel %vm33, %v64, 0.0
  %69 = vadd.xlane.f32.xlu0 %v68
  %v70 = vpop.xlane.xlu0 %69
  %v71 = vld [vmem:[%s1] sm:$0x3f]
  %73 = vset.pattern.permute.xlu0 0
  %74 = vperm.xlu0 %73, %v71
  %v75 = vpop.permute.xlu0 %74
  %v79 = vlaneseq
  %v80 = vand.u32 %v79, 127
  %v81 = vperm.slane %v67, %v80
  %v82 = vadd.s32 %v80, 4294967288
  %v83 = vperm.slane %v70, %v82
  %vm84 = vcmask 130112
  %v85 = vsel %vm84, %v83, %v81
  %vm86 = vcmask 1042434
  %v87 = vsel %vm86, %v85, %v85
  %vm88 = vcmask 1043459
  %v89 = vsel %vm88, %v85, %v87
  %vm90 = vcmask 1044484
  %v91 = vsel %vm90, %v85, %v89
  %vm92 = vcmask 1045509
  %v93 = vsel %vm92, %v85, %v91
  %v95 = vadd.f32 %v75, %v93
  %v96 = vmul.f32 %v61, 2.0
  %v97 = vsub.f32 %v95, %v96
  %v98 = vmax.f32 %v97, 0.0
  %v99 = vadd.f32 %v98, 1.0
  %v100 = vrcp.pop %v99
  %v101 = vmul.f32 %v99, %v100
  %v102 = vsub.f32 1.0, %v101
  %v103 = vmul.f32 %v100, %v102
  %v104 = vadd.f32 %v100, %v103
  %vm105 = vweird.f32 %v99
  %vm106 = vweird.f32 %v100
  %vm107 = vmor %vm105, %vm106
  %v108 = vsel %vm107, %v100, %v104
  %v109 = vand.u32 2147483647, %v99
  %vm110 = vcmp.eq.f32.partialorder %v109, 8.507059e+37
  %v111 = vand.u32 %v99, 2147483648
  %v112 = vor.u32 1.1754944e-38, %v111
  %v113 = vsel %vm110, %v112, %v108
  %v114 = vmul.f32 1.0, %v113
  %vm115 = vcmask 124928
  %116 = vst.msk [vmem:[%s9] sm:$0x7] %vm115, %v114
  %v117 = vsel %vm115, %v114, 0.0
  %v118 = vrot.slane %v117, 4
  %v119 = vadd.f32 %v117, %v118
  %v120 = vrot.slane %v119, 2
  %v121 = vadd.f32 %v119, %v120
  %v122 = vrot.slane %v121, 1
  %v123 = vadd.f32 %v121, %v122
  %v124 = vrcp.pop %v123
  %v125 = vmul.f32 %v123, %v124
  %v126 = vsub.f32 1.0, %v125
  %v127 = vmul.f32 %v124, %v126
  %v128 = vadd.f32 %v124, %v127
  %vm129 = vweird.f32 %v123
  %vm130 = vweird.f32 %v124
  %vm131 = vmor %vm129, %vm130
  %v132 = vsel %vm131, %v124, %v128
  %v133 = vand.u32 2147483647, %v123
  %vm134 = vcmp.eq.f32.partialorder %v133, 8.507059e+37
  %v135 = vand.u32 %v123, 2147483648
  %v136 = vor.u32 1.1754944e-38, %v135
  %v137 = vsel %vm134, %v136, %v132
  %v138 = vmul.f32 %v114, %v137
  %v139 = vadd.f32 %v138, 0.0
  %s140 = scalar_lea.vmem %s9, 4
  %vm141 = vcmask 128003
  %142 = vst.msk [vmem:[%s140 - $0x3] sm:$0x38] %vm141, %v114
  %v144 = vrot.slane %v114, 3
  %v146 = vsel %vm115, %v144, 0.0
  %v147 = vrot.slane %v146, 4
  %v148 = vadd.f32 %v146, %v147
  %v149 = vrot.slane %v148, 2
  %v150 = vadd.f32 %v148, %v149
  %v151 = vrot.slane %v150, 1
  %v152 = vadd.f32 %v150, %v151
  %v153 = vrcp.pop %v152
  %v154 = vmul.f32 %v152, %v153
  %v155 = vsub.f32 1.0, %v154
  %v156 = vmul.f32 %v153, %v155
  %v157 = vadd.f32 %v153, %v156
  %vm158 = vweird.f32 %v152
  %vm159 = vweird.f32 %v153
  %vm160 = vmor %vm158, %vm159
  %v161 = vsel %vm160, %v153, %v157
  %v162 = vand.u32 2147483647, %v152
  %vm163 = vcmp.eq.f32.partialorder %v162, 8.507059e+37
  %v164 = vand.u32 %v152, 2147483648
  %v165 = vor.u32 1.1754944e-38, %v164
  %v166 = vsel %vm163, %v165, %v161
  %v167 = vmul.f32 %v114, %v166
  %v169 = vrot.slane %v167, 3
  %v171 = vadd.f32 %v139, %v169
  %v173 = vperm.slane %v29, 0
  %v175 = vmul.f32 %v171, %v173
  %v177 = vsel %vm33, %v175, 0
  %v180 = vsel %vm33, %v30, 0
  %v183 = vsel %vm33, %v31, 0
  %185 = vmatpush.xpose.msra.mxu0 0.0
  %186 = vmatpush.xpose.msra.mxu0 0.0
  %187 = vmatpush.xpose.msra.mxu0 0.0
  %188 = vmatpush.xpose.msra.mxu0 0.0
  %189 = vmatpush.xpose.msra.mxu0 0.0
  %190 = vmatpush.xpose.msra.mxu0 0.0
  %191 = vmatpush.xpose.msra.mxu0 0.0
  %192 = vmatpush.xpose.msra.mxu0 0.0
  %193 = vmatpush.xpose.msra.mxu0 0.0
  %194 = vmatpush.xpose.msra.mxu0 0.0
  %195 = vmatpush.xpose.msra.mxu0 0.0
  %196 = vmatpush.xpose.msra.mxu0 0.0
  %197 = vmatpush.xpose.msra.mxu0 0.0
  %198 = vmatpush.xpose.msra.mxu0 0.0
  %199 = vmatpush.xpose.msra.mxu0 %v183
  %200 = vmatpush.xpose.msra.mxu0 %v180
  %201 = vmatmul.f32.gmra.mxu0 %v177
  %v202 = vpop.f32.mrf.mxu0
  %v203 = vadd.f32 0.0, %v202
  %204 = vdwg.mxu0
  %v205 = vsel %vm33, %v30, 0.0
  %206 = vadd.xlane.f32.xlu0 %v205
  %v207 = vpop.xlane.xlu0 %206
  %v208 = vsel %vm33, %v31, 0.0
  %209 = vadd.xlane.f32.xlu0 %v208
  %v210 = vpop.xlane.xlu0 %209
  %v211 = vadd.f32 %v205, %v208
  %v212 = vrot.slane %v211, 4
  %v213 = vadd.f32 %v211, %v212
  %v214 = vrot.slane %v213, 2
  %v215 = vadd.f32 %v213, %v214
  %v216 = vrot.slane %v215, 1
  %v217 = vadd.f32 %v215, %v216
  %v219 = vlaneseq
  %v220 = vshrl.u32 %v219, 7
  %222 = vset.pattern.permute.xlu0 %v220
  %223 = vperm.xlu0 %222, %v217
  %v224 = vpop.permute.xlu0 %223
  %v225 = vlaneseq
  %v226 = vshrl.u32 %v225, 7
  %v227 = vadd.s32 %v226, 8
  %228 = vset.pattern.permute.xlu0 %v227
  %229 = vperm.xlu0 %228, %v217
  %v230 = vpop.permute.xlu0 %229
  %v233 = vadd.f32 %v207, %v224
  %v234 = vadd.f32 %v210, %v230
  %v235 = vmul.f32 %v233, 0.5
  %v236 = vmul.f32 %v234, 0.5
  %vm237 = vcmp.eq.f32.partialorder %v235, 0.0
  %vm238 = vcmp.eq.f32.partialorder %v236, 0.0
  %v239 = vsel %vm237, 1.0, %v235
  %v240 = vsel %vm238, 1.0, %v236
  %243 = vset.pattern.permute.xlu0 0
  %244 = vperm.xlu0 %243, %v239
  %v245 = vpop.permute.xlu0 %244
  %246 = vset.pattern.permute.xlu0 0
  %247 = vperm.xlu0 %246, %v240
  %v248 = vpop.permute.xlu0 %247
  %v249 = vperm.slane %v245, %v80
  %v250 = vperm.slane %v248, %v82
  %v251 = vsel %vm84, %v250, %v249
  %v252 = vsel %vm86, %v251, %v251
  %v254 = vrcp.pop %v252
  %v255 = vmul.f32 %v252, %v254
  %v256 = vsub.f32 1.0, %v255
  %v257 = vmul.f32 %v254, %v256
  %v258 = vadd.f32 %v254, %v257
  %vm259 = vweird.f32 %v252
  %vm260 = vweird.f32 %v254
  %vm261 = vmor %vm259, %vm260
  %v262 = vsel %vm261, %v254, %v258
  %v263 = vand.u32 2147483647, %v252
  %vm264 = vcmp.eq.f32.partialorder %v263, 8.507059e+37
  %v265 = vand.u32 %v252, 2147483648
  %v266 = vor.u32 1.1754944e-38, %v265
  %v267 = vsel %vm264, %v266, %v262
  %v268 = vmul.f32 %v203, %v267
  %269 = vst.msk [vmem:[%s8] sm:$0x7] %vm115, %v268
  %v270 = vsel %vm115, %v268, -inf
  %v271 = vrot.slane %v270, 4
  %v272 = vmax.f32 %v270, %v271
  %v273 = vrot.slane %v272, 2
  %v274 = vmax.f32 %v272, %v273
  %v275 = vrot.slane %v274, 1
  %v276 = vmax.f32 %v274, %v275
  %v277 = vsub.f32 %v268, %v276
  %v278 = vmul.f32 %v277, 1.442695
  %v279 = vpow.pop %v278
  %v280 = vsel %vm115, %v279, 0.0
  %v281 = vrot.slane %v280, 4
  %v282 = vadd.f32 %v280, %v281
  %v283 = vrot.slane %v282, 2
  %v284 = vadd.f32 %v282, %v283
  %v285 = vrot.slane %v284, 1
  %v286 = vadd.f32 %v284, %v285
  %v287 = vrcp.pop %v286
  %v288 = vmul.f32 %v286, %v287
  %v289 = vsub.f32 1.0, %v288
  %v290 = vmul.f32 %v287, %v289
  %v291 = vadd.f32 %v287, %v290
  %vm292 = vweird.f32 %v286
  %vm293 = vweird.f32 %v287
  %vm294 = vmor %vm292, %vm293
  %v295 = vsel %vm294, %v287, %v291
  %v296 = vand.u32 2147483647, %v286
  %vm297 = vcmp.eq.f32.partialorder %v296, 8.507059e+37
  %v298 = vand.u32 %v286, 2147483648
  %v299 = vor.u32 1.1754944e-38, %v298
  %v300 = vsel %vm297, %v299, %v295
  %v301 = vmul.f32 %v279, %v300
  %v302 = vlaneseq
  %v303 = vshrl.u32 %v302, 7
  %v304 = vsel %vm115, %v301, -inf
  %v305 = vrot.slane %v304, 4
  %v306 = vmax.f32 %v304, %v305
  %v307 = vrot.slane %v306, 2
  %v308 = vmax.f32 %v306, %v307
  %v309 = vrot.slane %v308, 1
  %v310 = vmax.f32 %v308, %v309
  %vm311 = vcmp.eq.f32.partialorder %v301, %v310
  %v312 = vsel %vm311, %v303, 3
  %v313 = vsel %vm115, %v312, 2147483647
  %v314 = vrot.slane %v313, 4
  %vm315 = vcmp.lt.s32.totalorder %v313, %v314
  %v316 = vsel %vm315, %v313, %v314
  %v317 = vrot.slane %v316, 2
  %vm318 = vcmp.lt.s32.totalorder %v316, %v317
  %v319 = vsel %vm318, %v316, %v317
  %v320 = vrot.slane %v319, 1
  %vm321 = vcmp.lt.s32.totalorder %v319, %v320
  %v322 = vsel %vm321, %v319, %v320
  %vm323 = vcmp.eq.s32.totalorder %v303, %v322
  %v324 = vsel %vm323, %v301, 0.0
  %325 = vst.msk [vmem:[%s7] sm:$0x7] %vm115, %v324
  %v326 = vld [vmem:[%s5] sm:$0xff]
  %v327 = vld [vmem:[%s5 + $0x8] sm:$0xff]
  %vm328 = vcmask 64512
  %v330 = vsel %vm328, %v324, 0
  %332 = vmatpush.msra.mxu0 0.0
  %333 = vmatpush.msra.mxu0 0.0
  %334 = vmatpush.msra.mxu0 0.0
  %335 = vmatpush.msra.mxu0 0.0
  %336 = vmatpush.msra.mxu0 0.0
  %337 = vmatpush.msra.mxu0 0.0
  %338 = vmatpush.msra.mxu0 0.0
  %339 = vmatpush.msra.mxu0 0.0
  %340 = vmatpush.msra.mxu0 0.0
  %341 = vmatpush.msra.mxu0 0.0
  %342 = vmatpush.msra.mxu0 0.0
  %343 = vmatpush.msra.mxu0 0.0
  %344 = vmatpush.msra.mxu0 0.0
  %345 = vmatpush.msra.mxu0 0.0
  %346 = vmatpush.msra.mxu0 0.0
  %347 = vmatpush.msra.mxu0 %v27
  %348 = vmatmul.f32.gmra.mxu0 %v330
  %v349 = vpop.f32.mrf.mxu0
  %v350 = vadd.f32 0.0, %v349
  %351 = vdwg.mxu0
  %v353 = vsel %vm33, %v350, 0
  %355 = vmatpush.msra.mxu0 0.0
  %356 = vmatpush.msra.mxu0 0.0
  %357 = vmatpush.msra.mxu0 0.0
  %358 = vmatpush.msra.mxu0 0.0
  %359 = vmatpush.msra.mxu0 0.0
  %360 = vmatpush.msra.mxu0 0.0
  %361 = vmatpush.msra.mxu0 0.0
  %362 = vmatpush.msra.mxu0 0.0
  %363 = vmatpush.msra.mxu0 0.0
  %364 = vmatpush.msra.mxu0 0.0
  %365 = vmatpush.msra.mxu0 0.0
  %366 = vmatpush.msra.mxu0 0.0
  %367 = vmatpush.msra.mxu0 0.0
  %368 = vmatpush.msra.mxu0 0.0
  %369 = vmatpush.msra.mxu0 %v327
  %370 = vmatpush.msra.mxu0 %v326
  %371 = vmatmul.f32.gmra.mxu0 %v353
  %v372 = vpop.f32.mrf.mxu0
  %v373 = vadd.f32 0.0, %v372
  %374 = vdwg.mxu0
  %vm375 = vcmask 59392
  %376 = vst.msk [vmem:[%s6] sm:$0x7] %vm375, %v373
  %377 = vrot.lane.b32.xlu0 %v324, 120
  %v378 = vpop.permute.xlu0 %377
  %v379 = vsel %vm328, %v378, 0
  %381 = vmatpush.msra.mxu0 0.0
  %382 = vmatpush.msra.mxu0 0.0
  %383 = vmatpush.msra.mxu0 0.0
  %384 = vmatpush.msra.mxu0 0.0
  %385 = vmatpush.msra.mxu0 0.0
  %386 = vmatpush.msra.mxu0 0.0
  %387 = vmatpush.msra.mxu0 0.0
  %388 = vmatpush.msra.mxu0 0.0
  %389 = vmatpush.msra.mxu0 0.0
  %390 = vmatpush.msra.mxu0 0.0
  %391 = vmatpush.msra.mxu0 0.0
  %392 = vmatpush.msra.mxu0 0.0
  %393 = vmatpush.msra.mxu0 0.0
  %394 = vmatpush.msra.mxu0 0.0
  %395 = vmatpush.msra.mxu0 0.0
  %396 = vmatpush.msra.mxu0 %v28
  %397 = vmatmul.f32.gmra.mxu0 %v379
  %v398 = vpop.f32.mrf.mxu0
  %v399 = vadd.f32 0.0, %v398
  %400 = vdwg.mxu0
  %v402 = vsel %vm33, %v399, 0
  %404 = vmatpush.msra.mxu0 0.0
  %405 = vmatpush.msra.mxu0 0.0
  %406 = vmatpush.msra.mxu0 0.0
  %407 = vmatpush.msra.mxu0 0.0
  %408 = vmatpush.msra.mxu0 0.0
  %409 = vmatpush.msra.mxu0 0.0
  %410 = vmatpush.msra.mxu0 0.0
  %411 = vmatpush.msra.mxu0 0.0
  %412 = vmatpush.msra.mxu0 0.0
  %413 = vmatpush.msra.mxu0 0.0
  %414 = vmatpush.msra.mxu0 0.0
  %415 = vmatpush.msra.mxu0 0.0
  %416 = vmatpush.msra.mxu0 0.0
  %417 = vmatpush.msra.mxu0 0.0
  %418 = vmatpush.msra.mxu0 %v327
  %419 = vmatpush.msra.mxu0 %v326
  %420 = vmatmul.f32.gmra.mxu0 %v402
  %v421 = vpop.f32.mrf.mxu0
  %v422 = vadd.f32 0.0, %v421
  %423 = vdwg.mxu0
  %s424 = scalar_lea.vmem %s6, 4
  %425 = vst.msk [vmem:[%s424] sm:$0x7] %vm375, %v422
  // Predicated region
  $region26: #{impo_forward.1} parent=0 // pred_check
    _
  $region27: #{impo_forward.1} parent=0 // pred_check_branch
    %427 = sbr.rel (0) target = $region29
  $region28: #{impo_forward.1} parent=0 // pred_region
    _
  $region29: #{impo_forward.1} parent=0 // pred_fallthru
    _
  // Predicated region
  $region30: #{impo_forward.1} parent=0 // pred_check
    _
  $region31: #{impo_forward.1} parent=0 // pred_check_branch
    %429 = sbr.rel (0) target = $region33
  $region32: #{impo_forward.1} parent=0 // pred_region
    _
  $region33: #{impo_forward.1} parent=0 // pred_fallthru
    _
  // Predicated region
  $region34: #{impo_forward.1} parent=0 // pred_check
    _
  $region35: #{impo_forward.1} parent=0 // pred_check_branch
    %431 = sbr.rel (0) target = $region37
  $region36: #{impo_forward.1} parent=0 // pred_region
    _
  $region37: #{impo_forward.1} parent=0 // pred_fallthru
    _
  // Predicated region
  $region38: #{impo_forward.1} parent=0 // pred_check
    _
  $region39: #{impo_forward.1} parent=0 // pred_check_branch
    %433 = sbr.rel (0) target = $region41
  $region40: #{impo_forward.1} parent=0 // pred_region
    _
  $region41: #{impo_forward.1} parent=0 // pred_fallthru
    _
  // Predicated region
  $region42: #{impo_forward.1} parent=0 // pred_check
    _
  $region43: #{impo_forward.1} parent=0 // pred_check_branch
    %435 = sbr.rel (0) target = $region45
  $region44: #{impo_forward.1} parent=0 // pred_region
    _
  $region45: #{impo_forward.1} parent=0 // pred_fallthru
    _
  // Predicated region
  $region46: #{impo_forward.1} parent=0 // pred_check
    _
  $region47: #{impo_forward.1} parent=0 // pred_check_branch
    %437 = sbr.rel (0) target = $region49
  $region48: #{impo_forward.1} parent=0 // pred_region
    _
  $region49: #{impo_forward.1} parent=0 // pred_fallthru
    _
  // Predicated region
  $region50: #{impo_forward.1} parent=0 // pred_check
    _
  $region51: #{impo_forward.1} parent=0 // pred_check_branch
    %439 = sbr.rel (0) target = $region53
  $region52: #{impo_forward.1} parent=0 // pred_region
    _
  $region53: #{impo_forward.1} parent=0 // pred_fallthru
    _
  // Predicated region
  $region54: #{impo_forward.1} parent=0 // pred_check
    _
  $region55: #{impo_forward.1} parent=0 // pred_check_branch
    %441 = sbr.rel (0) target = $region57
  $region56: #{impo_forward.1} parent=0 // pred_region
    _
  $region57: #{impo_forward.1} parent=0 // pred_fallthru
    _

</llo_original>
